<compile_context>
chip_gen: v6e
topology: v6e:2x2x1
jax: 0.10.0
libtpu: 0.0.40
codegen_flags: <defaults>
</compile_context>

<pallas_src>
import functools

import jax
import jax.numpy as jnp
from jax import lax
from jax.experimental import pallas as pl
from jax.experimental.pallas import tpu as pltpu


def _round_up(n, m):
    return ((n + m - 1) // m) * m


def _mix32(x):
    """lowbias32-style uint32 -> uint32 hash (pure VPU integer ops)."""
    x = x ^ lax.shift_right_logical(x, jnp.uint32(16))
    x = x * jnp.uint32(0x7FEB352D)
    x = x ^ lax.shift_right_logical(x, jnp.uint32(15))
    x = x * jnp.uint32(0x846CA68B)
    x = x ^ lax.shift_right_logical(x, jnp.uint32(16))
    return x


def _random_bits(ctr_u32, seed_u32, salt):
    x = ctr_u32 ^ (seed_u32 * jnp.uint32(0x9E3779B1)
                   + jnp.uint32(salt) * jnp.uint32(0x85EBCA77))
    return _mix32(x)


def _dropout_relu_dropout(z, seed_u32, row_offset, salt_base, p):
    """Fused dropout(p) -> ReLU -> dropout(p) on an f32 tile.

    ReLU commutes with the (positive) inverted-dropout scale and keeps zeros,
    so the composition equals relu(z) * (1/(1-p))**2 * mask1 * mask2.
    Masks depend only on (seed, salt, global row, col) -> reproducible
    regardless of tile size / grid split / core assignment.
    """
    if p <= 0.0:
        return jnp.maximum(z, 0.0)
    tm, h = z.shape
    scale2 = 1.0 / ((1.0 - p) * (1.0 - p))
    thr = jnp.int32(int(round(p * (1 << 24))))      # drop iff bits24 < thr
    rows = lax.broadcasted_iota(jnp.int32, (tm, h), 0) + row_offset
    cols = lax.broadcasted_iota(jnp.int32, (tm, h), 1)
    ctr = (rows * h + cols).astype(jnp.uint32)
    b1 = _random_bits(ctr, seed_u32, salt_base)
    b2 = _random_bits(ctr, seed_u32, salt_base + 1)
    r1 = lax.shift_right_logical(b1, jnp.uint32(8)).astype(jnp.int32)
    r2 = lax.shift_right_logical(b2, jnp.uint32(8)).astype(jnp.int32)
    keep = jnp.logical_and(r1 >= thr, r2 >= thr)
    return jnp.where(keep, jnp.maximum(z, 0.0) * scale2, 0.0)


def _prenet_kernel(seed_ref, *refs, n_layers, tm, p):
    """Fused Prenet: all layers chained on one resident row tile."""
    x_ref = refs[0]
    o_ref = refs[-1]
    wb_refs = refs[1:-1]

    seed = seed_ref[0].astype(jnp.uint32)
    row_offset = pl.program_id(0) * tm

    h = x_ref[...]                               # (tm, K_pad) bf16
    a = None
    for layer in range(n_layers):
        w_ref = wb_refs[2 * layer]               # (K_in_pad, H_pad) bf16, VMEM-resident
        b_ref = wb_refs[2 * layer + 1]           # (1, H_pad) f32
        z = jnp.dot(h, w_ref[...], preferred_element_type=jnp.float32)
        z = z + b_ref[...]
        a = _dropout_relu_dropout(z, seed, row_offset, 2 * layer, p)
        if layer + 1 < n_layers:
            h = a.astype(jnp.bfloat16)           # bf16 MXU input for next layer
    o_ref[...] = a                               # f32 store


def _pad_to(a, shape, dtype):
    a = a.astype(dtype)
    if a.shape == tuple(shape):
        return a
    out = jnp.zeros(shape, dtype)
    return out.at[tuple(slice(0, s) for s in a.shape)].set(a)


def _prepare(x, params, row_tile):
    """Flatten rows and pad everything to lane-dense (multiple-of-128) shapes."""
    D = x.shape[-1]
    N = x.size // D
    H = params[0][0].shape[1]

    K_pad = _round_up(D, 128)
    H_pad = _round_up(H, 128)
    # >=256-row tiles on realistic inputs (perf review); shrink for tiny demos.
    tm = max(8, min(row_tile, _round_up(N, 8)))
    N_pad = _round_up(N, tm)

    x_p = _pad_to(x.reshape(N, D), (N_pad, K_pad), jnp.bfloat16)
    padded = []
    for layer, (w, b) in enumerate(params):
        k_in_pad = K_pad if layer == 0 else H_pad
        padded.append((_pad_to(w, (k_in_pad, H_pad), jnp.bfloat16),
                       _pad_to(b.reshape(1, -1), (1, H_pad), jnp.float32)))
    return x_p, padded, N, H, K_pad, H_pad, tm, N_pad


def prenet_forward(x, params, p, seed=0, *, row_tile=256):
    """x: (..., in_dim) f32.  params: list of (w (K_in, H), b (H,)).  -> (..., H) f32."""
    x_p, padded, N, H, K_pad, H_pad, tm, N_pad = _prepare(x, params, row_tile)
    n_layers = len(params)

    in_specs = [pl.BlockSpec(memory_space=pltpu.MemorySpace.SMEM),   # seed scalar
                pl.BlockSpec((tm, K_pad), lambda i: (i, 0))]         # x row tile
    flat_params = []
    for layer, (w_p, b_p) in enumerate(padded):
        k_in_pad = K_pad if layer == 0 else H_pad
        in_specs.append(pl.BlockSpec((k_in_pad, H_pad), lambda i: (0, 0)))  # resident W
        in_specs.append(pl.BlockSpec((1, H_pad), lambda i: (0, 0)))         # resident b
        flat_params += [w_p, b_p]

    kernel = functools.partial(_prenet_kernel, n_layers=n_layers, tm=tm, p=p)
    seed_arr = jnp.asarray([seed], jnp.int32)

    out = pl.pallas_call(
        kernel,
        out_shape=jax.ShapeDtypeStruct((N_pad, H_pad), jnp.float32),
        grid=(N_pad // tm,),
        in_specs=in_specs,
        out_specs=pl.BlockSpec((tm, H_pad), lambda i: (i, 0)),
        compiler_params=pltpu.CompilerParams(
            dimension_semantics=("parallel",),        # row tiles independent (megacore on v7x)
            vmem_limit_bytes=32 * 1024 * 1024),
    )(seed_arr, x_p, *flat_params)

    out = out[:N, :H]
    return out.reshape(x.shape[:-1] + (H,))


def prenet_reference(x, params, p, seed=0, *, row_tile=256):
    """Pure-JAX reference using the identical hash-based dropout masks."""
    x_p, padded, N, H, _, _, _, _ = _prepare(x, params, row_tile)
    seed_u32 = jnp.uint32(seed)
    h = x_p
    a = None
    for layer, (w_p, b_p) in enumerate(padded):
        z = jnp.dot(h, w_p, preferred_element_type=jnp.float32) + b_p
        a = _dropout_relu_dropout(z, seed_u32, 0, 2 * layer, p)
        h = a.astype(jnp.bfloat16)
    out = a[:N, :H]
    return out.reshape(x.shape[:-1] + (H,))


def init_prenet_params(key, in_dim, hidden_dim, layers):
    """torch.nn.Linear-style uniform init; weights stored pre-transposed as (in, out)."""
    params = []
    for layer in range(layers):
        k_in = in_dim if layer == 0 else hidden_dim
        key, kw, kb = jax.random.split(key, 3)
        bound = 1.0 / (k_in ** 0.5)
        w = jax.random.uniform(kw, (k_in, hidden_dim), jnp.float32, -bound, bound)
        b = jax.random.uniform(kb, (hidden_dim,), jnp.float32, -bound, bound)
        params.append((w, b))
    return params


if __name__ == "__main__":
    B, T = 2, 8
    in_dim, hidden_dim, layers = 32, 32, 2
    dropout_p = 0.5

    key = jax.random.PRNGKey(0)
    key, kx = jax.random.split(key)
    x = jax.random.normal(kx, (B, T, in_dim), jnp.float32)
    params = init_prenet_params(key, in_dim, hidden_dim, layers)

    out = prenet_forward(x, params, dropout_p, seed=1234)
    out = jax.block_until_ready(out)

    assert out.shape == (B, T, hidden_dim)
    assert bool(jnp.all(jnp.isfinite(out)))
    assert bool(jnp.all(out >= 0.0))   # ReLU followed by dropout => non-negative

    ref = prenet_reference(x, params, dropout_p, seed=1234)
    assert bool(jnp.allclose(out, ref, rtol=1e-2, atol=1e-2))

    print("KERNEL_OK")
</pallas_src>

<mosaic_0001>
module attributes {stable_mosaic.version = 11 : i64} {
  func.func @_prenet_kernel(%arg0: i32, %arg1: memref<1xi32, #tpu.memory_space<smem>>, %arg2: memref<16x128xbf16, #tpu.memory_space<vmem>>, %arg3: memref<128x128xbf16, #tpu.memory_space<vmem>>, %arg4: memref<1x128xf32, #tpu.memory_space<vmem>>, %arg5: memref<128x128xbf16, #tpu.memory_space<vmem>>, %arg6: memref<1x128xf32, #tpu.memory_space<vmem>>, %arg7: memref<16x128xf32, #tpu.memory_space<vmem>>) attributes {dimension_semantics = [#tpu.dimension_semantics<parallel>], iteration_bounds = array<i64: 1>, scalar_prefetch = 0 : i64, scratch_operands = 0 : i64, tpu.core_type = #tpu.core_type<tc>, window_params = [{transform_indices = @transform_0, window_bounds = array<i64: 1>}, {transform_indices = @transform_1, window_bounds = array<i64: 16, 128>}, {pipeline_mode = #tpu.pipeline_mode<synchronous>, transform_indices = @transform_2, window_bounds = array<i64: 128, 128>}, {pipeline_mode = #tpu.pipeline_mode<synchronous>, transform_indices = @transform_3, window_bounds = array<i64: 1, 128>}, {pipeline_mode = #tpu.pipeline_mode<synchronous>, transform_indices = @transform_4, window_bounds = array<i64: 128, 128>}, {pipeline_mode = #tpu.pipeline_mode<synchronous>, transform_indices = @transform_5, window_bounds = array<i64: 1, 128>}, {transform_indices = @transform_6, window_bounds = array<i64: 16, 128>}]} {
    %c0 = arith.constant 0 : index
    %0 = memref.load %arg1[%c0] : memref<1xi32, #tpu.memory_space<smem>>
    %c16_i32 = arith.constant 16 : i32
    %1 = arith.muli %arg0, %c16_i32 : i32
    %c0_0 = arith.constant 0 : index
    %c0_1 = arith.constant 0 : index
    %2 = vector.load %arg2[%c0_0, %c0_1] : memref<16x128xbf16, #tpu.memory_space<vmem>>, vector<16x128xbf16>
    %c0_2 = arith.constant 0 : index
    %c0_3 = arith.constant 0 : index
    %3 = vector.load %arg3[%c0_2, %c0_3] : memref<128x128xbf16, #tpu.memory_space<vmem>>, vector<128x128xbf16>
    %cst = arith.constant dense<0.000000e+00> : vector<16x128xf32>
    %4 = tpu.matmul %2, %3, %cst {dimension_numbers = #tpu.dot_dimension_numbers<[1], [0], [0], [1], [0, 0, 1, 1], [], []>} : vector<16x128xbf16>, vector<128x128xbf16>, vector<16x128xf32> -> vector<16x128xf32>
    %c0_4 = arith.constant 0 : index
    %c0_5 = arith.constant 0 : index
    %5 = vector.load %arg4[%c0_4, %c0_5] : memref<1x128xf32, #tpu.memory_space<vmem>>, vector<1x128xf32>
    %6 = vector.broadcast %5 : vector<1x128xf32> to vector<16x128xf32>
    %7 = arith.addf %4, %6 : vector<16x128xf32>
    %8 = tpu.iota {dimensions = array<i32: 0>} : vector<16x128xi32>
    %9 = vector.broadcast %1 : i32 to vector<16x128xi32>
    %10 = arith.addi %8, %9 : vector<16x128xi32>
    %11 = tpu.iota {dimensions = array<i32: 1>} : vector<16x128xi32>
    %c128_i32 = arith.constant 128 : i32
    %12 = vector.broadcast %c128_i32 : i32 to vector<16x128xi32>
    %13 = arith.muli %10, %12 : vector<16x128xi32>
    %14 = arith.addi %13, %11 : vector<16x128xi32>
    %c-1640531535_i32 = arith.constant -1640531535 : i32
    %15 = arith.muli %0, %c-1640531535_i32 : i32
    %c0_i32 = arith.constant 0 : i32
    %c-2048144777_i32 = arith.constant -2048144777 : i32
    %16 = arith.muli %c0_i32, %c-2048144777_i32 : i32
    %17 = arith.addi %15, %16 : i32
    %18 = vector.broadcast %17 : i32 to vector<16x128xi32>
    %19 = arith.xori %14, %18 : vector<16x128xi32>
    %c16_i32_6 = arith.constant 16 : i32
    %20 = vector.broadcast %c16_i32_6 : i32 to vector<16x128xi32>
    %21 = arith.shrui %19, %20 : vector<16x128xi32>
    %22 = arith.xori %19, %21 : vector<16x128xi32>
    %c2146121005_i32 = arith.constant 2146121005 : i32
    %23 = vector.broadcast %c2146121005_i32 : i32 to vector<16x128xi32>
    %24 = arith.muli %22, %23 : vector<16x128xi32>
    %c15_i32 = arith.constant 15 : i32
    %25 = vector.broadcast %c15_i32 : i32 to vector<16x128xi32>
    %26 = arith.shrui %24, %25 : vector<16x128xi32>
    %27 = arith.xori %24, %26 : vector<16x128xi32>
    %c-2073254261_i32 = arith.constant -2073254261 : i32
    %28 = vector.broadcast %c-2073254261_i32 : i32 to vector<16x128xi32>
    %29 = arith.muli %27, %28 : vector<16x128xi32>
    %c16_i32_7 = arith.constant 16 : i32
    %30 = vector.broadcast %c16_i32_7 : i32 to vector<16x128xi32>
    %31 = arith.shrui %29, %30 : vector<16x128xi32>
    %32 = arith.xori %29, %31 : vector<16x128xi32>
    %c-1640531535_i32_8 = arith.constant -1640531535 : i32
    %33 = arith.muli %0, %c-1640531535_i32_8 : i32
    %c1_i32 = arith.constant 1 : i32
    %c-2048144777_i32_9 = arith.constant -2048144777 : i32
    %34 = arith.muli %c1_i32, %c-2048144777_i32_9 : i32
    %35 = arith.addi %33, %34 : i32
    %36 = vector.broadcast %35 : i32 to vector<16x128xi32>
    %37 = arith.xori %14, %36 : vector<16x128xi32>
    %c16_i32_10 = arith.constant 16 : i32
    %38 = vector.broadcast %c16_i32_10 : i32 to vector<16x128xi32>
    %39 = arith.shrui %37, %38 : vector<16x128xi32>
    %40 = arith.xori %37, %39 : vector<16x128xi32>
    %c2146121005_i32_11 = arith.constant 2146121005 : i32
    %41 = vector.broadcast %c2146121005_i32_11 : i32 to vector<16x128xi32>
    %42 = arith.muli %40, %41 : vector<16x128xi32>
    %c15_i32_12 = arith.constant 15 : i32
    %43 = vector.broadcast %c15_i32_12 : i32 to vector<16x128xi32>
    %44 = arith.shrui %42, %43 : vector<16x128xi32>
    %45 = arith.xori %42, %44 : vector<16x128xi32>
    %c-2073254261_i32_13 = arith.constant -2073254261 : i32
    %46 = vector.broadcast %c-2073254261_i32_13 : i32 to vector<16x128xi32>
    %47 = arith.muli %45, %46 : vector<16x128xi32>
    %c16_i32_14 = arith.constant 16 : i32
    %48 = vector.broadcast %c16_i32_14 : i32 to vector<16x128xi32>
    %49 = arith.shrui %47, %48 : vector<16x128xi32>
    %50 = arith.xori %47, %49 : vector<16x128xi32>
    %c8_i32 = arith.constant 8 : i32
    %51 = vector.broadcast %c8_i32 : i32 to vector<16x128xi32>
    %52 = arith.shrui %32, %51 : vector<16x128xi32>
    %c8_i32_15 = arith.constant 8 : i32
    %53 = vector.broadcast %c8_i32_15 : i32 to vector<16x128xi32>
    %54 = arith.shrui %50, %53 : vector<16x128xi32>
    %c8388608_i32 = arith.constant 8388608 : i32
    %55 = vector.broadcast %c8388608_i32 : i32 to vector<16x128xi32>
    %56 = arith.cmpi sge, %52, %55 : vector<16x128xi32>
    %c8388608_i32_16 = arith.constant 8388608 : i32
    %57 = vector.broadcast %c8388608_i32_16 : i32 to vector<16x128xi32>
    %58 = arith.cmpi sge, %54, %57 : vector<16x128xi32>
    %59 = arith.andi %56, %58 : vector<16x128xi1>
    %cst_17 = arith.constant 0.000000e+00 : f32
    %60 = vector.broadcast %cst_17 : f32 to vector<16x128xf32>
    %61 = arith.maximumf %7, %60 : vector<16x128xf32>
    %cst_18 = arith.constant 4.000000e+00 : f32
    %62 = vector.broadcast %cst_18 : f32 to vector<16x128xf32>
    %63 = arith.mulf %61, %62 : vector<16x128xf32>
    %cst_19 = arith.constant 0.000000e+00 : f32
    %64 = vector.broadcast %cst_19 : f32 to vector<16x128xf32>
    %65 = arith.select %59, %63, %64 : vector<16x128xi1>, vector<16x128xf32>
    %66 = arith.truncf %65 : vector<16x128xf32> to vector<16x128xbf16>
    %c0_20 = arith.constant 0 : index
    %c0_21 = arith.constant 0 : index
    %67 = vector.load %arg5[%c0_20, %c0_21] : memref<128x128xbf16, #tpu.memory_space<vmem>>, vector<128x128xbf16>
    %cst_22 = arith.constant dense<0.000000e+00> : vector<16x128xf32>
    %68 = tpu.matmul %66, %67, %cst_22 {dimension_numbers = #tpu.dot_dimension_numbers<[1], [0], [0], [1], [0, 0, 1, 1], [], []>} : vector<16x128xbf16>, vector<128x128xbf16>, vector<16x128xf32> -> vector<16x128xf32>
    %c0_23 = arith.constant 0 : index
    %c0_24 = arith.constant 0 : index
    %69 = vector.load %arg6[%c0_23, %c0_24] : memref<1x128xf32, #tpu.memory_space<vmem>>, vector<1x128xf32>
    %70 = vector.broadcast %69 : vector<1x128xf32> to vector<16x128xf32>
    %71 = arith.addf %68, %70 : vector<16x128xf32>
    %72 = tpu.iota {dimensions = array<i32: 0>} : vector<16x128xi32>
    %73 = vector.broadcast %1 : i32 to vector<16x128xi32>
    %74 = arith.addi %72, %73 : vector<16x128xi32>
    %75 = tpu.iota {dimensions = array<i32: 1>} : vector<16x128xi32>
    %c128_i32_25 = arith.constant 128 : i32
    %76 = vector.broadcast %c128_i32_25 : i32 to vector<16x128xi32>
    %77 = arith.muli %74, %76 : vector<16x128xi32>
    %78 = arith.addi %77, %75 : vector<16x128xi32>
    %c-1640531535_i32_26 = arith.constant -1640531535 : i32
    %79 = arith.muli %0, %c-1640531535_i32_26 : i32
    %c2_i32 = arith.constant 2 : i32
    %c-2048144777_i32_27 = arith.constant -2048144777 : i32
    %80 = arith.muli %c2_i32, %c-2048144777_i32_27 : i32
    %81 = arith.addi %79, %80 : i32
    %82 = vector.broadcast %81 : i32 to vector<16x128xi32>
    %83 = arith.xori %78, %82 : vector<16x128xi32>
    %c16_i32_28 = arith.constant 16 : i32
    %84 = vector.broadcast %c16_i32_28 : i32 to vector<16x128xi32>
    %85 = arith.shrui %83, %84 : vector<16x128xi32>
    %86 = arith.xori %83, %85 : vector<16x128xi32>
    %c2146121005_i32_29 = arith.constant 2146121005 : i32
    %87 = vector.broadcast %c2146121005_i32_29 : i32 to vector<16x128xi32>
    %88 = arith.muli %86, %87 : vector<16x128xi32>
    %c15_i32_30 = arith.constant 15 : i32
    %89 = vector.broadcast %c15_i32_30 : i32 to vector<16x128xi32>
    %90 = arith.shrui %88, %89 : vector<16x128xi32>
    %91 = arith.xori %88, %90 : vector<16x128xi32>
    %c-2073254261_i32_31 = arith.constant -2073254261 : i32
    %92 = vector.broadcast %c-2073254261_i32_31 : i32 to vector<16x128xi32>
    %93 = arith.muli %91, %92 : vector<16x128xi32>
    %c16_i32_32 = arith.constant 16 : i32
    %94 = vector.broadcast %c16_i32_32 : i32 to vector<16x128xi32>
    %95 = arith.shrui %93, %94 : vector<16x128xi32>
    %96 = arith.xori %93, %95 : vector<16x128xi32>
    %c-1640531535_i32_33 = arith.constant -1640531535 : i32
    %97 = arith.muli %0, %c-1640531535_i32_33 : i32
    %c3_i32 = arith.constant 3 : i32
    %c-2048144777_i32_34 = arith.constant -2048144777 : i32
    %98 = arith.muli %c3_i32, %c-2048144777_i32_34 : i32
    %99 = arith.addi %97, %98 : i32
    %100 = vector.broadcast %99 : i32 to vector<16x128xi32>
    %101 = arith.xori %78, %100 : vector<16x128xi32>
    %c16_i32_35 = arith.constant 16 : i32
    %102 = vector.broadcast %c16_i32_35 : i32 to vector<16x128xi32>
    %103 = arith.shrui %101, %102 : vector<16x128xi32>
    %104 = arith.xori %101, %103 : vector<16x128xi32>
    %c2146121005_i32_36 = arith.constant 2146121005 : i32
    %105 = vector.broadcast %c2146121005_i32_36 : i32 to vector<16x128xi32>
    %106 = arith.muli %104, %105 : vector<16x128xi32>
    %c15_i32_37 = arith.constant 15 : i32
    %107 = vector.broadcast %c15_i32_37 : i32 to vector<16x128xi32>
    %108 = arith.shrui %106, %107 : vector<16x128xi32>
    %109 = arith.xori %106, %108 : vector<16x128xi32>
    %c-2073254261_i32_38 = arith.constant -2073254261 : i32
    %110 = vector.broadcast %c-2073254261_i32_38 : i32 to vector<16x128xi32>
    %111 = arith.muli %109, %110 : vector<16x128xi32>
    %c16_i32_39 = arith.constant 16 : i32
    %112 = vector.broadcast %c16_i32_39 : i32 to vector<16x128xi32>
    %113 = arith.shrui %111, %112 : vector<16x128xi32>
    %114 = arith.xori %111, %113 : vector<16x128xi32>
    %c8_i32_40 = arith.constant 8 : i32
    %115 = vector.broadcast %c8_i32_40 : i32 to vector<16x128xi32>
    %116 = arith.shrui %96, %115 : vector<16x128xi32>
    %c8_i32_41 = arith.constant 8 : i32
    %117 = vector.broadcast %c8_i32_41 : i32 to vector<16x128xi32>
    %118 = arith.shrui %114, %117 : vector<16x128xi32>
    %c8388608_i32_42 = arith.constant 8388608 : i32
    %119 = vector.broadcast %c8388608_i32_42 : i32 to vector<16x128xi32>
    %120 = arith.cmpi sge, %116, %119 : vector<16x128xi32>
    %c8388608_i32_43 = arith.constant 8388608 : i32
    %121 = vector.broadcast %c8388608_i32_43 : i32 to vector<16x128xi32>
    %122 = arith.cmpi sge, %118, %121 : vector<16x128xi32>
    %123 = arith.andi %120, %122 : vector<16x128xi1>
    %cst_44 = arith.constant 0.000000e+00 : f32
    %124 = vector.broadcast %cst_44 : f32 to vector<16x128xf32>
    %125 = arith.maximumf %71, %124 : vector<16x128xf32>
    %cst_45 = arith.constant 4.000000e+00 : f32
    %126 = vector.broadcast %cst_45 : f32 to vector<16x128xf32>
    %127 = arith.mulf %125, %126 : vector<16x128xf32>
    %cst_46 = arith.constant 0.000000e+00 : f32
    %128 = vector.broadcast %cst_46 : f32 to vector<16x128xf32>
    %129 = arith.select %123, %127, %128 : vector<16x128xi1>, vector<16x128xf32>
    %c0_47 = arith.constant 0 : index
    %c0_48 = arith.constant 0 : index
    %130 = vector.load %arg7[%c0_47, %c0_48] : memref<16x128xf32, #tpu.memory_space<vmem>>, vector<16x128xf32>
    tpu.vector_store %arg7[%c0_47, %c0_48], %129 {strides = array<i32>} : memref<16x128xf32, #tpu.memory_space<vmem>>, vector<16x128xf32>,
    return
  }
  func.func @transform_0(%arg0: i32) -> i32 {
    %c0_i32 = arith.constant 0 : i32
    %c0_i32_0 = arith.constant 0 : i32
    return %c0_i32 : i32
  }
  func.func @transform_1(%arg0: i32) -> (i32, i32) {
    %c0_i32 = arith.constant 0 : i32
    %c0_i32_0 = arith.constant 0 : i32
    return %arg0, %c0_i32 : i32, i32
  }
  func.func @transform_2(%arg0: i32) -> (i32, i32) {
    %c0_i32 = arith.constant 0 : i32
    %c0_i32_0 = arith.constant 0 : i32
    %c0_i32_1 = arith.constant 0 : i32
    return %c0_i32, %c0_i32_0 : i32, i32
  }
  func.func @transform_3(%arg0: i32) -> (i32, i32) {
    %c0_i32 = arith.constant 0 : i32
    %c0_i32_0 = arith.constant 0 : i32
    %c0_i32_1 = arith.constant 0 : i32
    return %c0_i32, %c0_i32_0 : i32, i32
  }
  func.func @transform_4(%arg0: i32) -> (i32, i32) {
    %c0_i32 = arith.constant 0 : i32
    %c0_i32_0 = arith.constant 0 : i32
    %c0_i32_1 = arith.constant 0 : i32
    return %c0_i32, %c0_i32_0 : i32, i32
  }
  func.func @transform_5(%arg0: i32) -> (i32, i32) {
    %c0_i32 = arith.constant 0 : i32
    %c0_i32_0 = arith.constant 0 : i32
    %c0_i32_1 = arith.constant 0 : i32
    return %c0_i32, %c0_i32_0 : i32, i32
  }
  func.func @transform_6(%arg0: i32) -> (i32, i32) {
    %c0_i32 = arith.constant 0 : i32
    %c0_i32_0 = arith.constant 0 : i32
    return %arg0, %c0_i32 : i32, i32
  }
}

</mosaic_0001>

<llo_original>
// kernel: tpu_custom_call.1
$region0: #{tpu_custom_call.1}
  #allocation0 [shape = 'u32[]', space=smem, size = 0x4, offset = 0x4, fixed_abs, tag = 'smem constant byte address 0x4 - core index']
  #allocation1 [shape = 'u32[144,128]{1,0:T(1,128)}', space=vmem, size = 0x12000, scoped, tag = 'internal scratch']
  #allocation2 [shape = 's32[1]{0:T(128)S(6)}', space=smem, size = 0x200, scoped, tag = 'scoped memory for tpu_custom_call.1']
  %s0 = inlined_call_operand.<no memory space> [shape: s32[1], index: 0, kind: input, shape index: {}]
  %s1 = inlined_call_operand.hbm [shape: bf16[16,128], index: 1, kind: input, shape index: {}]
  %s2 = inlined_call_operand.hbm [shape: bf16[128,128], index: 2, kind: input, shape index: {}]
  %s3 = inlined_call_operand.vmem [shape: f32[1,128], index: 3, kind: input, shape index: {}]
  %s4 = inlined_call_operand.hbm [shape: bf16[128,128], index: 4, kind: input, shape index: {}]
  %s5 = inlined_call_operand.vmem [shape: f32[1,128], index: 5, kind: input, shape index: {}]
  %s6 = inlined_call_operand.hbm [shape: f32[16,128], index: 6, kind: output, shape index: {}]
  %s7 = sld [smem:[#allocation0]]
  $region46: #{tpu_custom_call.1} parent=0
    _
  %s9 = ssub.s32 1, %s7
  %s10 = scalar_select 0, %s9, %s7
  %11 = sst [smem:[#allocation2]] %s0
  $region1: #{tpu_custom_call.1} parent=0
    #allocation3 [shape = 'u8[4096]{0}', space=vmem, size = 0x1000, scoped, tag = 'input window, operand 1, single buffered']
    #allocation4 [shape = 's32[1]{0}', space=sflag, size = 0x4, scoped, tag = 'scoped memory for tpu_custom_call.1']
    #allocation5 [shape = 's32[1]{0}', space=sflag, size = 0x4, scoped, tag = 'scoped memory for tpu_custom_call.1']
    #allocation6 [shape = 'u8[32768]{0}', space=vmem, size = 0x8000, scoped, tag = 'input window, operand 2, single buffered']
    #allocation7 [shape = 's32[1]{0}', space=sflag, size = 0x4, scoped, tag = 'scoped memory for tpu_custom_call.1']
    #allocation8 [shape = 'u8[32768]{0}', space=vmem, size = 0x8000, scoped, tag = 'input window, operand 4, single buffered']
    #allocation9 [shape = 'u8[8192]{0}', space=vmem, size = 0x2000, scoped, tag = 'output window, operand 0, single buffered']
    %12 = vsyncpa [#allocation4], 0
    %13 = vsyncpa [#allocation7], 0
    %14 = vsyncpa [#allocation5], 0
    // Predicated region
    $region2: #{tpu_custom_call.1} parent=1 // pred_check
      _
    $region3: #{tpu_custom_call.1} parent=1 // pred_check_branch
      %16 = sbr.rel (0) target = $region5
    $region4: #{tpu_custom_call.1} parent=1 // pred_region
      _
    $region5: #{tpu_custom_call.1} parent=1 // pred_fallthru
      _
    // Predicated region
    $region6: #{tpu_custom_call.1} parent=1 // pred_check
      _
    $region7: #{tpu_custom_call.1} parent=1 // pred_check_branch
      %18 = sbr.rel (0) target = $region9
    $region8: #{tpu_custom_call.1} parent=1 // pred_region
      %s20 = ssub.s32 128, 128
      %21 = vsyncadd [#allocation4], %s20
      %s22 = sshll.u32 [#allocation3], 4
      %s23 = int_to_ptr.vmem [resolvable:$true] %s22
      %28 = dma.hbm_to_vmem [thread:$0]  %s1, 128, %s23, [#allocation4], 64, 64, 4
    $region9: #{tpu_custom_call.1} parent=1 // pred_fallthru
      _
    // Predicated region
    $region10: #{tpu_custom_call.1} parent=1 // pred_check
      _
    $region11: #{tpu_custom_call.1} parent=1 // pred_check_branch
      %30 = sbr.rel (0) target = $region13
    $region12: #{tpu_custom_call.1} parent=1 // pred_region
      %s32 = ssub.s32 1024, 1024
      %33 = vsyncadd [#allocation7], %s32
      %s34 = sshll.u32 [#allocation6], 4
      %s35 = int_to_ptr.vmem [resolvable:$true] %s34
      %40 = dma.hbm_to_vmem [thread:$0]  %s2, 1024, %s35, [#allocation7], 64, 64, 4
    $region13: #{tpu_custom_call.1} parent=1 // pred_fallthru
      _
    // Predicated region
    $region14: #{tpu_custom_call.1} parent=1 // pred_check
      _
    $region15: #{tpu_custom_call.1} parent=1 // pred_check_branch
      %42 = sbr.rel (0) target = $region17
    $region16: #{tpu_custom_call.1} parent=1 // pred_region
      _
    $region17: #{tpu_custom_call.1} parent=1 // pred_fallthru
      _
    // Predicated region
    $region18: #{tpu_custom_call.1} parent=1 // pred_check
      _
    $region19: #{tpu_custom_call.1} parent=1 // pred_check_branch
      %44 = sbr.rel (0) target = $region21
    $region20: #{tpu_custom_call.1} parent=1 // pred_region
      %s46 = ssub.s32 1024, 1024
      %47 = vsyncadd [#allocation7], %s46
      %s48 = sshll.u32 [#allocation8], 4
      %s49 = int_to_ptr.vmem [resolvable:$true] %s48
      %54 = dma.hbm_to_vmem [thread:$0]  %s4, 1024, %s49, [#allocation7], 64, 64, 4
    $region21: #{tpu_custom_call.1} parent=1 // pred_fallthru
      _
    // Predicated region
    $region22: #{tpu_custom_call.1} parent=1 // pred_check
      _
    $region23: #{tpu_custom_call.1} parent=1 // pred_check_branch
      %56 = sbr.rel (0) target = $region25
    $region24: #{tpu_custom_call.1} parent=1 // pred_region
      _
    $region25: #{tpu_custom_call.1} parent=1 // pred_fallthru
      _
    // Predicated region
    $region26: #{tpu_custom_call.1} parent=1 // pred_check
      _
    $region27: #{tpu_custom_call.1} parent=1 // pred_check_branch
      %58 = sbr.rel (0) target = $region29
    $region28: #{tpu_custom_call.1} parent=1 // pred_region
      %59 = dma.done [#allocation4], 128
    $region29: #{tpu_custom_call.1} parent=1 // pred_fallthru
      _
    // Predicated region
    $region30: #{tpu_custom_call.1} parent=1 // pred_check
      _
    $region31: #{tpu_custom_call.1} parent=1 // pred_check_branch
      %61 = sbr.rel (0) target = $region33
    $region32: #{tpu_custom_call.1} parent=1 // pred_region
      %62 = dma.done [#allocation7], 1024
    $region33: #{tpu_custom_call.1} parent=1 // pred_fallthru
      _
    // Predicated region
    $region34: #{tpu_custom_call.1} parent=1 // pred_check
      _
    $region35: #{tpu_custom_call.1} parent=1 // pred_check_branch
      %64 = sbr.rel (0) target = $region37
    $region36: #{tpu_custom_call.1} parent=1 // pred_region
      %65 = dma.done [#allocation7], 1024
    $region37: #{tpu_custom_call.1} parent=1 // pred_fallthru
      _
    %s67 = sld [smem:[#allocation2]]
    %s68 = smul.u32 0, 16
    %v69 = vld [vmem:[#allocation3] sm:$0xf]
    %v70 = vld [vmem:[#allocation3 + $0x4] sm:$0xf]
    %v71 = vld [vmem:[#allocation6] sm:$0xf]
    %v72 = vld [vmem:[#allocation6 + $0x4] sm:$0xf]
    %v73 = vld [vmem:[#allocation6 + $0x8] sm:$0xf]
    %v74 = vld [vmem:[#allocation6 + $0xc] sm:$0xf]
    %v75 = vld [vmem:[#allocation6 + $0x10] sm:$0xf]
    %v76 = vld [vmem:[#allocation6 + $0x14] sm:$0xf]
    %v77 = vld [vmem:[#allocation6 + $0x18] sm:$0xf]
    %v78 = vld [vmem:[#allocation6 + $0x1c] sm:$0xf]
    %v79 = vld [vmem:[#allocation6 + $0x20] sm:$0xf]
    %v80 = vld [vmem:[#allocation6 + $0x24] sm:$0xf]
    %v81 = vld [vmem:[#allocation6 + $0x28] sm:$0xf]
    %v82 = vld [vmem:[#allocation6 + $0x2c] sm:$0xf]
    %v83 = vld [vmem:[#allocation6 + $0x30] sm:$0xf]
    %v84 = vld [vmem:[#allocation6 + $0x34] sm:$0xf]
    %v85 = vld [vmem:[#allocation6 + $0x38] sm:$0xf]
    %v86 = vld [vmem:[#allocation6 + $0x3c] sm:$0xf]
    %v87 = vld [vmem:[%s3] sm:$0x1]
    %v89 = vlaneseq
    %v90 = vshrl.u32 %v89, 7
    %v91 = vsub.s32 0, %v90
    %v92 = vrot.slane %v87, %v91
    %v96 = vunpack.c.l.b16 %v69
    %v97 = vunpack.c.l.b16 %v70
    %v98 = vpack.c.b16 %v97, %v96
    %v116 = vunpack.c.l.b16 %v71
    %v117 = vunpack.c.l.b16 %v72
    %v118 = vunpack.c.l.b16 %v73
    %v119 = vunpack.c.l.b16 %v74
    %v120 = vunpack.c.l.b16 %v75
    %v121 = vunpack.c.l.b16 %v76
    %v122 = vunpack.c.l.b16 %v77
    %v123 = vunpack.c.l.b16 %v78
    %v124 = vunpack.c.l.b16 %v79
    %v125 = vunpack.c.l.b16 %v80
    %v126 = vunpack.c.l.b16 %v81
    %v127 = vunpack.c.l.b16 %v82
    %v128 = vunpack.c.l.b16 %v83
    %v129 = vunpack.c.l.b16 %v84
    %v130 = vunpack.c.l.b16 %v85
    %v131 = vunpack.c.l.b16 %v86
    %v132 = vpack.c.b16 %v117, %v116
    %v133 = vpack.c.b16 %v119, %v118
    %v134 = vpack.c.b16 %v121, %v120
    %v135 = vpack.c.b16 %v123, %v122
    %v136 = vpack.c.b16 %v125, %v124
    %v137 = vpack.c.b16 %v127, %v126
    %v138 = vpack.c.b16 %v129, %v128
    %v139 = vpack.c.b16 %v131, %v130
    %148 = vmatprep.subr.bf16.mxu0 0
    %149 = vmatpush1.bf16.msra.mxu0 %v139
    %150 = vmatprep.subr.bf16.mxu0 0
    %151 = vmatpush1.bf16.msra.mxu0 %v138
    %152 = vmatprep.subr.bf16.mxu0 0
    %153 = vmatpush1.bf16.msra.mxu0 %v137
    %154 = vmatprep.subr.bf16.mxu0 0
    %155 = vmatpush1.bf16.msra.mxu0 %v136
    %156 = vmatprep.subr.bf16.mxu0 0
    %157 = vmatpush1.bf16.msra.mxu0 %v135
    %158 = vmatprep.subr.bf16.mxu0 0
    %159 = vmatpush1.bf16.msra.mxu0 %v134
    %160 = vmatprep.subr.bf16.mxu0 0
    %161 = vmatpush1.bf16.msra.mxu0 %v133
    %162 = vmatprep.subr.bf16.mxu0 0
    %163 = vmatpush1.bf16.msra.mxu0 %v132
    %164 = vmatprep.subr.bf16.mxu0 0
    %165 = vmatpush2.bf16.msra.mxu0 0
    %166 = vmatprep.subr.bf16.mxu0 0
    %167 = vmatpush2.bf16.msra.mxu0 0
    %168 = vmatprep.subr.bf16.mxu0 0
    %169 = vmatpush2.bf16.msra.mxu0 0
    %170 = vmatprep.subr.bf16.mxu0 0
    %171 = vmatpush2.bf16.msra.mxu0 0
    %172 = vmatprep.subr.bf16.mxu0 0
    %173 = vmatpush2.bf16.msra.mxu0 0
    %174 = vmatprep.subr.bf16.mxu0 0
    %175 = vmatpush2.bf16.msra.mxu0 0
    %176 = vmatprep.subr.bf16.mxu0 0
    %177 = vmatpush2.bf16.msra.mxu0 0
    %178 = vmatprep.subr.bf16.mxu0 0
    %179 = vmatpush2.bf16.msra.mxu0 0
    %180 = vmatprep.mubr.bf16.mxu0 0
    %181 = vmatmul.mubr.bf16.gmra.mxu0 %v98
    %v182 = vpop.f32.mrf.mxu0
    %v183 = vadd.f32 %v92, %v182
    %v184 = vpop.f32.mrf.mxu0
    %v185 = vpop.f32.mrf.mxu0
    %v186 = vadd.f32 %v92, %v185
    %v187 = vpop.f32.mrf.mxu0
    %188 = vdwg.mxu0
    %v189 = vlaneseq
    %v190 = vshrl.u32 %v189, 7
    %v191 = vadd.s32 %v190, 8
    %v192 = vstv %s68
    %v193 = vadd.s32 %v190, %v192
    %v194 = vadd.s32 %v191, %v192
    %v195 = vlaneseq
    %v196 = vand.u32 %v195, 127
    %v197 = vmul.u32 %v193, 128
    %v198 = vmul.u32 %v194, 128
    %v199 = vadd.s32 %v197, %v196
    %v200 = vadd.s32 %v198, %v196
    %s201 = smul.u32 %s67, 2654435761
    %v202 = vstv %s201
    %v203 = vxor.u32 %v199, %v202
    %v204 = vxor.u32 %v200, %v202
    %v205 = vshrl.u32 %v203, 16
    %v206 = vshrl.u32 %v204, 16
    %v207 = vxor.u32 %v203, %v205
    %v208 = vxor.u32 %v204, %v206
    %v209 = vmul.u32 %v207, 2146121005
    %v210 = vmul.u32 %v208, 2146121005
    %v211 = vshrl.u32 %v209, 15
    %v212 = vshrl.u32 %v210, 15
    %v213 = vxor.u32 %v209, %v211
    %v214 = vxor.u32 %v210, %v212
    %v215 = vmul.u32 %v213, 2221713035
    %v216 = vmul.u32 %v214, 2221713035
    %v217 = vshrl.u32 %v215, 16
    %v218 = vshrl.u32 %v216, 16
    %v219 = vxor.u32 %v215, %v217
    %v220 = vxor.u32 %v216, %v218
    %s221 = sadd.s32 %s201, 2246822519
    %v222 = vstv %s221
    %v223 = vxor.u32 %v199, %v222
    %v224 = vxor.u32 %v200, %v222
    %v225 = vshrl.u32 %v223, 16
    %v226 = vshrl.u32 %v224, 16
    %v227 = vxor.u32 %v223, %v225
    %v228 = vxor.u32 %v224, %v226
    %v229 = vmul.u32 %v227, 2146121005
    %v230 = vmul.u32 %v228, 2146121005
    %v231 = vshrl.u32 %v229, 15
    %v232 = vshrl.u32 %v230, 15
    %v233 = vxor.u32 %v229, %v231
    %v234 = vxor.u32 %v230, %v232
    %v235 = vmul.u32 %v233, 2221713035
    %v236 = vmul.u32 %v234, 2221713035
    %v237 = vshrl.u32 %v235, 16
    %v238 = vshrl.u32 %v236, 16
    %v239 = vxor.u32 %v235, %v237
    %v240 = vxor.u32 %v236, %v238
    %v241 = vshrl.u32 %v219, 8
    %v242 = vshrl.u32 %v220, 8
    %v243 = vshrl.u32 %v239, 8
    %v244 = vshrl.u32 %v240, 8
    %vm245 = vcmp.ge.s32.totalorder %v241, 8388608
    %vm246 = vcmp.ge.s32.totalorder %v242, 8388608
    %vm247 = vcmp.ge.s32.totalorder %v243, 8388608
    %vm248 = vcmp.ge.s32.totalorder %v244, 8388608
    %vm249 = vmand %vm245, %vm247
    %vm250 = vmand %vm246, %vm248
    %v251 = vmax.f32 %v183, 0.0
    %v252 = vmax.f32 %v186, 0.0
    %v253 = vmul.f32 %v251, 4.0
    %v254 = vmul.f32 %v252, 4.0
    %v255 = vsel %vm249, %v253, 0.0
    %v256 = vsel %vm250, %v254, 0.0
    %v257 = vpack.c.bf16 %v256, %v255
    %v258 = vld [vmem:[#allocation8] sm:$0xf]
    %v259 = vld [vmem:[#allocation8 + $0x4] sm:$0xf]
    %v260 = vld [vmem:[#allocation8 + $0x8] sm:$0xf]
    %v261 = vld [vmem:[#allocation8 + $0xc] sm:$0xf]
    %v262 = vld [vmem:[#allocation8 + $0x10] sm:$0xf]
    %v263 = vld [vmem:[#allocation8 + $0x14] sm:$0xf]
    %v264 = vld [vmem:[#allocation8 + $0x18] sm:$0xf]
    %v265 = vld [vmem:[#allocation8 + $0x1c] sm:$0xf]
    %v266 = vld [vmem:[#allocation8 + $0x20] sm:$0xf]
    %v267 = vld [vmem:[#allocation8 + $0x24] sm:$0xf]
    %v268 = vld [vmem:[#allocation8 + $0x28] sm:$0xf]
    %v269 = vld [vmem:[#allocation8 + $0x2c] sm:$0xf]
    %v270 = vld [vmem:[#allocation8 + $0x30] sm:$0xf]
    %v271 = vld [vmem:[#allocation8 + $0x34] sm:$0xf]
    %v272 = vld [vmem:[#allocation8 + $0x38] sm:$0xf]
    %v273 = vld [vmem:[#allocation8 + $0x3c] sm:$0xf]
    %v274 = vld [vmem:[%s5] sm:$0x1]
    %v276 = vlaneseq
    %v277 = vshrl.u32 %v276, 7
    %v278 = vsub.s32 0, %v277
    %v279 = vrot.slane %v274, %v278
    %v297 = vunpack.c.l.b16 %v258
    %v298 = vunpack.c.l.b16 %v259
    %v299 = vunpack.c.l.b16 %v260
    %v300 = vunpack.c.l.b16 %v261
    %v301 = vunpack.c.l.b16 %v262
    %v302 = vunpack.c.l.b16 %v263
    %v303 = vunpack.c.l.b16 %v264
    %v304 = vunpack.c.l.b16 %v265
    %v305 = vunpack.c.l.b16 %v266
    %v306 = vunpack.c.l.b16 %v267
    %v307 = vunpack.c.l.b16 %v268
    %v308 = vunpack.c.l.b16 %v269
    %v309 = vunpack.c.l.b16 %v270
    %v310 = vunpack.c.l.b16 %v271
    %v311 = vunpack.c.l.b16 %v272
    %v312 = vunpack.c.l.b16 %v273
    %v313 = vpack.c.b16 %v298, %v297
    %v314 = vpack.c.b16 %v300, %v299
    %v315 = vpack.c.b16 %v302, %v301
    %v316 = vpack.c.b16 %v304, %v303
    %v317 = vpack.c.b16 %v306, %v305
    %v318 = vpack.c.b16 %v308, %v307
    %v319 = vpack.c.b16 %v310, %v309
    %v320 = vpack.c.b16 %v312, %v311
    %329 = vmatprep.subr.bf16.mxu0 0
    %330 = vmatpush1.bf16.msra.mxu0 %v320
    %331 = vmatprep.subr.bf16.mxu0 0
    %332 = vmatpush1.bf16.msra.mxu0 %v319
    %333 = vmatprep.subr.bf16.mxu0 0
    %334 = vmatpush1.bf16.msra.mxu0 %v318
    %335 = vmatprep.subr.bf16.mxu0 0
    %336 = vmatpush1.bf16.msra.mxu0 %v317
    %337 = vmatprep.subr.bf16.mxu0 0
    %338 = vmatpush1.bf16.msra.mxu0 %v316
    %339 = vmatprep.subr.bf16.mxu0 0
    %340 = vmatpush1.bf16.msra.mxu0 %v315
    %341 = vmatprep.subr.bf16.mxu0 0
    %342 = vmatpush1.bf16.msra.mxu0 %v314
    %343 = vmatprep.subr.bf16.mxu0 0
    %344 = vmatpush1.bf16.msra.mxu0 %v313
    %345 = vmatprep.subr.bf16.mxu0 0
    %346 = vmatpush2.bf16.msra.mxu0 0
    %347 = vmatprep.subr.bf16.mxu0 0
    %348 = vmatpush2.bf16.msra.mxu0 0
    %349 = vmatprep.subr.bf16.mxu0 0
    %350 = vmatpush2.bf16.msra.mxu0 0
    %351 = vmatprep.subr.bf16.mxu0 0
    %352 = vmatpush2.bf16.msra.mxu0 0
    %353 = vmatprep.subr.bf16.mxu0 0
    %354 = vmatpush2.bf16.msra.mxu0 0
    %355 = vmatprep.subr.bf16.mxu0 0
    %356 = vmatpush2.bf16.msra.mxu0 0
    %357 = vmatprep.subr.bf16.mxu0 0
    %358 = vmatpush2.bf16.msra.mxu0 0
    %359 = vmatprep.subr.bf16.mxu0 0
    %360 = vmatpush2.bf16.msra.mxu0 0
    %361 = vmatprep.mubr.bf16.mxu0 0
    %362 = vmatmul.mubr.bf16.gmra.mxu0 %v257
    %v363 = vpop.f32.mrf.mxu0
    %v364 = vadd.f32 %v279, %v363
    %v365 = vpop.f32.mrf.mxu0
    %v366 = vpop.f32.mrf.mxu0
    %v367 = vadd.f32 %v279, %v366
    %v368 = vpop.f32.mrf.mxu0
    %369 = vdwg.mxu0
    %s370 = sadd.s32 %s201, 198677742
    %v371 = vstv %s370
    %v372 = vxor.u32 %v199, %v371
    %v373 = vxor.u32 %v200, %v371
    %v374 = vshrl.u32 %v372, 16
    %v375 = vshrl.u32 %v373, 16
    %v376 = vxor.u32 %v372, %v374
    %v377 = vxor.u32 %v373, %v375
    %v378 = vmul.u32 %v376, 2146121005
    %v379 = vmul.u32 %v377, 2146121005
    %v380 = vshrl.u32 %v378, 15
    %v381 = vshrl.u32 %v379, 15
    %v382 = vxor.u32 %v378, %v380
    %v383 = vxor.u32 %v379, %v381
    %v384 = vmul.u32 %v382, 2221713035
    %v385 = vmul.u32 %v383, 2221713035
    %v386 = vshrl.u32 %v384, 16
    %v387 = vshrl.u32 %v385, 16
    %v388 = vxor.u32 %v384, %v386
    %v389 = vxor.u32 %v385, %v387
    %s390 = sadd.s32 %s201, 2445500261
    %v391 = vstv %s390
    %v392 = vxor.u32 %v199, %v391
    %v393 = vxor.u32 %v200, %v391
    %v394 = vshrl.u32 %v392, 16
    %v395 = vshrl.u32 %v393, 16
    %v396 = vxor.u32 %v392, %v394
    %v397 = vxor.u32 %v393, %v395
    %v398 = vmul.u32 %v396, 2146121005
    %v399 = vmul.u32 %v397, 2146121005
    %v400 = vshrl.u32 %v398, 15
    %v401 = vshrl.u32 %v399, 15
    %v402 = vxor.u32 %v398, %v400
    %v403 = vxor.u32 %v399, %v401
    %v404 = vmul.u32 %v402, 2221713035
    %v405 = vmul.u32 %v403, 2221713035
    %v406 = vshrl.u32 %v404, 16
    %v407 = vshrl.u32 %v405, 16
    %v408 = vxor.u32 %v404, %v406
    %v409 = vxor.u32 %v405, %v407
    %v410 = vshrl.u32 %v388, 8
    %v411 = vshrl.u32 %v389, 8
    %v412 = vshrl.u32 %v408, 8
    %v413 = vshrl.u32 %v409, 8
    %vm414 = vcmp.ge.s32.totalorder %v410, 8388608
    %vm415 = vcmp.ge.s32.totalorder %v411, 8388608
    %vm416 = vcmp.ge.s32.totalorder %v412, 8388608
    %vm417 = vcmp.ge.s32.totalorder %v413, 8388608
    %vm418 = vmand %vm414, %vm416
    %vm419 = vmand %vm415, %vm417
    %v420 = vmax.f32 %v364, 0.0
    %v421 = vmax.f32 %v367, 0.0
    %v422 = vmul.f32 %v420, 4.0
    %v423 = vmul.f32 %v421, 4.0
    %v424 = vsel %vm418, %v422, 0.0
    %v425 = vsel %vm419, %v423, 0.0
    %426 = vst [vmem:[#allocation9] sm:$0xff] %v424
    %427 = vst [vmem:[#allocation9 + $0x8] sm:$0xff] %v425
    // Predicated region
    $region38: #{tpu_custom_call.1} parent=1 // pred_check
      _
    $region39: #{tpu_custom_call.1} parent=1 // pred_check_branch
      %429 = sbr.rel (0) target = $region41
    $region40: #{tpu_custom_call.1} parent=1 // pred_region
      %s431 = ssub.s32 256, 256
      %432 = vsyncadd [#allocation5], %s431
      %s433 = sshll.u32 [#allocation9], 4
      %s434 = int_to_ptr.vmem [resolvable:$true] %s433
      %439 = dma.vmem_to_hbm [thread:$0]  %s434, 256, %s6, [#allocation5], 128, 128, 8
    $region41: #{tpu_custom_call.1} parent=1 // pred_fallthru
      _
    // Predicated region
    $region42: #{tpu_custom_call.1} parent=1 // pred_check
      _
    $region43: #{tpu_custom_call.1} parent=1 // pred_check_branch
      %441 = sbr.rel (0) target = $region45
    $region44: #{tpu_custom_call.1} parent=1 // pred_region
      %442 = dma.done [#allocation5], 256
    $region45: #{tpu_custom_call.1} parent=1 // pred_fallthru
      _
    %443 = vsyncpa [#allocation4], 1
    %444 = vsyncpa [#allocation7], 1
    %445 = vsyncpa [#allocation5], 1

</llo_original>
